<compile_context>
chip_gen: v5e
topology: v5e:2x2
jax: 0.10.0
libtpu: 0.0.40
codegen_flags: <defaults>
</compile_context>

<pallas_src>
import numpy as np
import jax
import jax.numpy as jnp
from jax.experimental import pallas as pl
from jax.experimental.pallas import tpu as pltpu

# ----------------------------------------------------------------------------
# Hard-coded config (stands in for the YAML file of the reference module).
# encoder 'layer': [in_ch, out_ch, kernel, stride, padding]
# decoder 'layer': [in_ch, out_ch, kernel, stride, padding, output_padding]
# ----------------------------------------------------------------------------
ENCODER_CONFIG = [
    {"layer": [1, 8, 3, 2, 1]}, {"act": "ReLU"},
    {"layer": [8, 16, 3, 2, 1]}, {"act": "ReLU"},
]
DECODER_CONFIG = [
    {"layer": [16, 8, 3, 2, 1, 1]}, {"act": "ReLU"},
    {"layer": [8, 1, 3, 2, 1, 1]}, {"act": "Tanh"},
]

IMG = 16       # input spatial size (square)
N_BATCH = 2    # example batch size


def _parse_blocks(block_config):
    ops = []
    i = 0
    while i < len(block_config):
        cfg = block_config[i]
        if "layer" in cfg:
            attrs = list(cfg["layer"])
            act = "none"
            if i + 1 < len(block_config) and "act" in block_config[i + 1]:
                act = block_config[i + 1]["act"].lower()
                i += 1
            ops.append((attrs, act))
        i += 1
    return ops


_ENC_OPS = _parse_blocks(ENCODER_CONFIG)
_DEC_OPS = _parse_blocks(DECODER_CONFIG)

# TODO(synk): the fused kernel below is specialized to this config
# (3x3 kernels, stride 2, padding 1, output_padding 1, Cin/Cout of the first /
# last layer == 1).  A different YAML config would need the kernel regenerated.
assert len(_ENC_OPS) == 2 and len(_DEC_OPS) == 2
for attrs, _ in _ENC_OPS:
    assert attrs[2] == 3 and attrs[3] == 2 and attrs[4] == 1
for attrs, _ in _DEC_OPS:
    assert attrs[2] == 3 and attrs[3] == 2 and attrs[4] == 1 and attrs[5] == 1
assert [a for _, a in _ENC_OPS] == ["relu", "relu"]
assert [a for _, a in _DEC_OPS] == ["relu", "tanh"]
assert IMG % 4 == 0

C0 = _ENC_OPS[0][0][0]   # 1
C1 = _ENC_OPS[0][0][1]   # 8
C2 = _ENC_OPS[1][0][1]   # 16
C3 = _DEC_OPS[0][0][1]   # 8
C4 = _DEC_OPS[1][0][1]   # 1
assert C0 == 1 and C4 == 1          # makes NCHW <-> (N*H, W) a free reshape

H0 = IMG                 # 16  (square images, so W == H per layer)
H1 = IMG // 2            # 8
H2 = IMG // 4            # 4
H3 = IMG // 2            # 8
H4 = IMG                 # 16

# Lane width of each layer's activation rows: lanes = w*C + c.
L0 = H0 * C0             # 16
L1 = H1 * C1             # 64
L2 = H2 * C2             # 64
L3 = H3 * C3             # 64
L4 = H4 * C4             # 16
BIAS_W = max(L1, L2, L3, L4)


# ----------------------------------------------------------------------------
# Fused Pallas kernel: whole encoder + decoder for NB images per grid step.
# Layout: every activation is a 2-D VMEM buffer (rows = n*H + h, lanes = w*C+c).
# ----------------------------------------------------------------------------
def _autoencoder_kernel(x_ref, w1_ref, w2_ref, w3_ref, w4_ref, b_ref, o_ref,
                        xb, a1, a2, a3):
    f32 = jnp.float32
    nb = x_ref.shape[0] // H0          # images in this grid step (static)
    m1 = nb * H1                       # rows of enc-L1 output / dec-L2 input
    m2 = nb * H2                       # rows of enc-L2 output / dec-L1 input

    def conv_down(src, w_ref, bias, m_out, h_out):
        # Conv2d(k=3, s=2, p=1) as 3 banded matmuls (one per vertical tap).
        # src rows: 1 + n*(2*h_out) + h, with src[0] == 0 (top padding row).
        d0 = jnp.dot(src[pl.ds(0, m_out, 2), :], w_ref[0],
                     preferred_element_type=f32)
        d1 = jnp.dot(src[pl.ds(1, m_out, 2), :], w_ref[1],
                     preferred_element_type=f32)
        d2 = jnp.dot(src[pl.ds(2, m_out, 2), :], w_ref[2],
                     preferred_element_type=f32)
        # Vertical tap 0 of output row oh reads image row 2*oh-1; for oh == 0
        # that is the zero pad (image 0) or the previous image's last row, so
        # mask that contribution to 0 (== zero padding).
        t = jax.lax.broadcasted_iota(jnp.int32, d0.shape, 0)
        d0 = jnp.where(t % h_out != 0, d0, 0.0)
        return d0 + d1 + d2 + bias

    def deconv_up(src, w_ref, bias, m_in, h_in):
        # ConvTranspose2d(k=3, s=2, p=1, op=1), sub-pixel (even/odd output row)
        # decomposition: even rows need only the ki=1 tap; odd rows need ki=2
        # (same input row) and ki=0 (next input row).
        s0 = src[0:m_in, :]
        s1 = src[1:m_in + 1, :]
        d_even = jnp.dot(s0, w_ref[0], preferred_element_type=f32)
        d_odd0 = jnp.dot(s0, w_ref[1], preferred_element_type=f32)
        d_odd1 = jnp.dot(s1, w_ref[2], preferred_element_type=f32)
        # "next input row" of each image's last row is out of range -> mask.
        t = jax.lax.broadcasted_iota(jnp.int32, d_odd1.shape, 0)
        d_odd1 = jnp.where(t % h_in != h_in - 1, d_odd1, 0.0)
        return d_even + bias, d_odd0 + d_odd1 + bias

    # Zero only the padding rows (4 single-row stores).  The interiors of every
    # scratch buffer are fully overwritten each grid step, so this is safe even
    # when the batch axis is sharded across TensorCores.
    xb[0:1, :] = jnp.zeros((1, L0), f32)
    a1[0:1, :] = jnp.zeros((1, L1), f32)
    a2[m2:m2 + 1, :] = jnp.zeros((1, L2), f32)
    a3[m1:m1 + 1, :] = jnp.zeros((1, L3), f32)

    # Stage the input block below the zero padding row.
    xb[1:1 + nb * H0, :] = x_ref[...]

    # ---- encoder: Conv2d(1->8) + ReLU ; Conv2d(8->16) + ReLU ----------------
    a1[1:1 + m1, :] = jnp.maximum(
        conv_down(xb, w1_ref, b_ref[0:1, 0:L1], m1, H1), 0.0)
    a2[0:m2, :] = jnp.maximum(
        conv_down(a1, w2_ref, b_ref[1:2, 0:L2], m2, H2), 0.0)

    # ---- decoder L1: ConvTranspose2d(16->8) + ReLU --------------------------
    ev3, od3 = deconv_up(a2, w3_ref, b_ref[2:3, 0:L3], m2, H2)
    a3[pl.ds(0, m2, 2), :] = jnp.maximum(ev3, 0.0)
    a3[pl.ds(1, m2, 2), :] = jnp.maximum(od3, 0.0)

    # ---- decoder L2: ConvTranspose2d(8->1) + Tanh, straight to the output ---
    ev4, od4 = deconv_up(a3, w4_ref, b_ref[3:4, 0:L4], m1, H3)
    o_ref[pl.ds(0, m1, 2), :] = jnp.tanh(ev4)
    o_ref[pl.ds(1, m1, 2), :] = jnp.tanh(od4)


def _choose_nb(n_img):
    for nb in (8, 4, 2, 1):
        if n_img % nb == 0:
            return nb
    return 1


def _fused_call(x_rows, w1p, w2p, w3p, w4p, bp):
    n_rows = x_rows.shape[0]
    n_img = n_rows // H0
    nb = _choose_nb(n_img)
    grid = n_img // nb
    return pl.pallas_call(
        _autoencoder_kernel,
        out_shape=jax.ShapeDtypeStruct((n_img * H4, L4), jnp.float32),
        grid=(grid,),
        in_specs=[
            pl.BlockSpec((nb * H0, L0), lambda g: (g, 0)),
            pl.BlockSpec((3, L0, L1), lambda g: (0, 0, 0)),
            pl.BlockSpec((3, L1, L2), lambda g: (0, 0, 0)),
            pl.BlockSpec((3, L2, L3), lambda g: (0, 0, 0)),
            pl.BlockSpec((3, L3, L4), lambda g: (0, 0, 0)),
            pl.BlockSpec((4, BIAS_W), lambda g: (0, 0)),
        ],
        out_specs=pl.BlockSpec((nb * H4, L4), lambda g: (g, 0)),
        scratch_shapes=[
            pltpu.VMEM((nb * H0 + 1, L0), jnp.float32),   # padded input
            pltpu.VMEM((nb * H1 + 1, L1), jnp.float32),   # enc-L1 out (+pad row)
            pltpu.VMEM((nb * H2 + 1, L2), jnp.float32),   # enc-L2 out (+pad row)
            pltpu.VMEM((nb * H3 + 1, L3), jnp.float32),   # dec-L1 out (+pad row)
        ],
        compiler_params=pltpu.CompilerParams(
            dimension_semantics=("parallel",)),
    )(x_rows, w1p, w2p, w3p, w4p, bp)


@jax.jit
def autoencoder_forward(x_nchw, packed):
    n = x_nchw.shape[0]
    # C0 == 1 / C4 == 1, so NCHW <-> (N*H, W) are free row-major reshapes.
    x_rows = x_nchw.reshape(n * H0, H0)
    out_rows = _fused_call(x_rows, *packed)
    return out_rows.reshape(n, C4, H4, H4)


# ----------------------------------------------------------------------------
# Parameter construction (deterministic, stands in for PyTorch default init),
# plus one-time packing into the kernel's banded-matrix layouts.
# ----------------------------------------------------------------------------
def init_params(key):
    params = {"enc": [], "dec": []}
    for attrs, act in _ENC_OPS:
        cin, cout, k, s, p = attrs
        key, kw_, kb_ = jax.random.split(key, 3)
        bound = 1.0 / jnp.sqrt(cin * k * k)
        w = jax.random.uniform(kw_, (cout, cin, k, k), jnp.float32, -bound, bound)
        b = jax.random.uniform(kb_, (cout,), jnp.float32, -bound, bound)
        params["enc"].append((w, b, attrs, act))
    for attrs, act in _DEC_OPS:
        cin, cout, k, s, p, op = attrs
        key, kw_, kb_ = jax.random.split(key, 3)
        bound = 1.0 / jnp.sqrt(cout * k * k)
        w = jax.random.uniform(kw_, (cin, cout, k, k), jnp.float32, -bound, bound)
        b = jax.random.uniform(kb_, (cout,), jnp.float32, -bound, bound)
        params["dec"].append((w, b, attrs, act))
    return params


def _pack_conv(w, b, w_in):
    """Conv2d(k=3,s=2,p=1) -> 3 banded matrices (W_in*Cin, W_out*Cout)."""
    w = np.asarray(w, np.float32)            # (cout, cin, 3, 3)
    cout, cin = w.shape[0], w.shape[1]
    w_out = w_in // 2
    m = np.zeros((3, w_in * cin, w_out * cout), np.float32)
    for i in range(3):
        for ow in range(w_out):
            for j in range(3):
                wi = 2 * ow - 1 + j
                if 0 <= wi < w_in:
                    m[i, wi * cin:(wi + 1) * cin,
                      ow * cout:(ow + 1) * cout] += w[:, :, i, j].T
    brow = np.tile(np.asarray(b, np.float32), w_out)
    return m, brow


def _pack_deconv(w, b, w_in):
    """ConvTranspose2d(k=3,s=2,p=1,op=1) -> 3 banded matrices.
    Term 0 (even output rows, ki=1); term 1 (odd rows, same input row, ki=2);
    term 2 (odd rows, next input row, ki=0)."""
    w = np.asarray(w, np.float32)            # (cin, cout, 3, 3)
    cin, cout = w.shape[0], w.shape[1]
    w_out = 2 * w_in
    m = np.zeros((3, w_in * cin, w_out * cout), np.float32)
    for term, ki in enumerate((1, 2, 0)):
        for v in range(w_out):
            if v % 2 == 0:
                pairs = ((v // 2, 1),)
            else:
                bcol = (v - 1) // 2
                pairs = tuple(p for p in ((bcol + 1, 0), (bcol, 2))
                              if p[0] < w_in)
            for bi, kj in pairs:
                m[term, bi * cin:(bi + 1) * cin,
                  v * cout:(v + 1) * cout] += w[:, :, ki, kj]
    brow = np.tile(np.asarray(b, np.float32), w_out)
    return m, brow


def pack_params(params):
    (w1, b1, _, _), (w2, b2, _, _) = params["enc"]
    (w3, b3, _, _), (w4, b4, _, _) = params["dec"]
    m1, r1 = _pack_conv(w1, b1, H0)          # (3, 16, 64)
    m2, r2 = _pack_conv(w2, b2, H1)          # (3, 64, 64)
    m3, r3 = _pack_deconv(w3, b3, H2)        # (3, 64, 64)
    m4, r4 = _pack_deconv(w4, b4, H3)        # (3, 64, 16)
    bp = np.zeros((4, BIAS_W), np.float32)
    bp[0, :L1] = r1
    bp[1, :L2] = r2
    bp[2, :L3] = r3
    bp[3, :L4] = r4
    return (jnp.asarray(m1), jnp.asarray(m2), jnp.asarray(m3), jnp.asarray(m4),
            jnp.asarray(bp))


# ----------------------------------------------------------------------------
# Pure-XLA reference matching PyTorch Conv2d / ConvTranspose2d semantics.
# ----------------------------------------------------------------------------
def _apply_act_ref(x, act):
    if act == "relu":
        return jnp.maximum(x, 0.0)
    if act == "tanh":
        return jnp.tanh(x)
    return x


def reference_forward(x_nchw, params):
    x = x_nchw
    for w, b, attrs, act in params["enc"]:
        _, _, k, s, p = attrs
        x = jax.lax.conv_general_dilated(
            x, w, (s, s), [(p, p), (p, p)],
            dimension_numbers=("NCHW", "OIHW", "NCHW"))
        x = _apply_act_ref(x + b.reshape(1, -1, 1, 1), act)
    for w, b, attrs, act in params["dec"]:
        _, _, k, s, p, op = attrs
        w_eq = jnp.transpose(jnp.flip(w, axis=(2, 3)), (1, 0, 2, 3))
        x = jax.lax.conv_general_dilated(
            x, w_eq, (1, 1),
            [(k - 1 - p, k - 1 - p + op), (k - 1 - p, k - 1 - p + op)],
            lhs_dilation=(s, s),
            dimension_numbers=("NCHW", "OIHW", "NCHW"))
        x = _apply_act_ref(x + b.reshape(1, -1, 1, 1), act)
    return x


if __name__ == "__main__":
    key = jax.random.PRNGKey(0)
    key, kx = jax.random.split(key)
    x = jax.random.normal(kx, (N_BATCH, C0, IMG, IMG), jnp.float32)  # NCHW

    params = init_params(key)
    packed = pack_params(params)          # one-time, outside the hot path

    out = jax.block_until_ready(autoencoder_forward(x, packed))

    ref = jax.block_until_ready(reference_forward(x, params))
    assert out.shape == (N_BATCH, C4, IMG, IMG), out.shape
    err = float(jnp.max(jnp.abs(out - ref)))
    assert jnp.allclose(out, ref, rtol=1e-4, atol=1e-4), err

    print("KERNEL_OK")
</pallas_src>

<mosaic_0001>
module attributes {stable_mosaic.version = 11 : i64} {
  func.func @_autoencoder_kernel(%arg0: i32, %arg1: memref<32x16xf32, #tpu.memory_space<vmem>>, %arg2: memref<3x16x64xf32, #tpu.memory_space<vmem>>, %arg3: memref<3x64x64xf32, #tpu.memory_space<vmem>>, %arg4: memref<3x64x64xf32, #tpu.memory_space<vmem>>, %arg5: memref<3x64x16xf32, #tpu.memory_space<vmem>>, %arg6: memref<4x64xf32, #tpu.memory_space<vmem>>, %arg7: memref<32x16xf32, #tpu.memory_space<vmem>>, %arg8: memref<33x16xf32, #tpu.memory_space<vmem>>, %arg9: memref<17x64xf32, #tpu.memory_space<vmem>>, %arg10: memref<9x64xf32, #tpu.memory_space<vmem>>, %arg11: memref<17x64xf32, #tpu.memory_space<vmem>>) attributes {dimension_semantics = [#tpu.dimension_semantics<parallel>], iteration_bounds = array<i64: 1>, scalar_prefetch = 0 : i64, scratch_operands = 4 : i64, tpu.core_type = #tpu.core_type<tc>, window_params = [{transform_indices = @transform_0, window_bounds = array<i64: 32, 16>}, {pipeline_mode = #tpu.pipeline_mode<synchronous>, transform_indices = @transform_1, window_bounds = array<i64: 3, 16, 64>}, {pipeline_mode = #tpu.pipeline_mode<synchronous>, transform_indices = @transform_2, window_bounds = array<i64: 3, 64, 64>}, {pipeline_mode = #tpu.pipeline_mode<synchronous>, transform_indices = @transform_3, window_bounds = array<i64: 3, 64, 64>}, {pipeline_mode = #tpu.pipeline_mode<synchronous>, transform_indices = @transform_4, window_bounds = array<i64: 3, 64, 16>}, {pipeline_mode = #tpu.pipeline_mode<synchronous>, transform_indices = @transform_5, window_bounds = array<i64: 4, 64>}, {transform_indices = @transform_6, window_bounds = array<i64: 32, 16>}]} {
    %cst = arith.constant 0.000000e+00 : f32
    %0 = vector.broadcast %cst : f32 to vector<1x16xf32>
    %c0 = arith.constant 0 : index
    %c0_0 = arith.constant 0 : index
    %1 = vector.load %arg8[%c0, %c0_0] : memref<33x16xf32, #tpu.memory_space<vmem>>, vector<1x16xf32>
    tpu.vector_store %arg8[%c0, %c0_0], %0 {strides = array<i32>} : memref<33x16xf32, #tpu.memory_space<vmem>>, vector<1x16xf32>,
    %cst_1 = arith.constant 0.000000e+00 : f32
    %2 = vector.broadcast %cst_1 : f32 to vector<1x64xf32>
    %c0_2 = arith.constant 0 : index
    %c0_3 = arith.constant 0 : index
    %3 = vector.load %arg9[%c0_2, %c0_3] : memref<17x64xf32, #tpu.memory_space<vmem>>, vector<1x64xf32>
    tpu.vector_store %arg9[%c0_2, %c0_3], %2 {strides = array<i32>} : memref<17x64xf32, #tpu.memory_space<vmem>>, vector<1x64xf32>,
    %cst_4 = arith.constant 0.000000e+00 : f32
    %4 = vector.broadcast %cst_4 : f32 to vector<1x64xf32>
    %c8 = arith.constant 8 : index
    %c0_5 = arith.constant 0 : index
    %5 = vector.load %arg10[%c8, %c0_5] : memref<9x64xf32, #tpu.memory_space<vmem>>, vector<1x64xf32>
    tpu.vector_store %arg10[%c8, %c0_5], %4 {strides = array<i32>} : memref<9x64xf32, #tpu.memory_space<vmem>>, vector<1x64xf32>,
    %cst_6 = arith.constant 0.000000e+00 : f32
    %6 = vector.broadcast %cst_6 : f32 to vector<1x64xf32>
    %c16 = arith.constant 16 : index
    %c0_7 = arith.constant 0 : index
    %7 = vector.load %arg11[%c16, %c0_7] : memref<17x64xf32, #tpu.memory_space<vmem>>, vector<1x64xf32>
    tpu.vector_store %arg11[%c16, %c0_7], %6 {strides = array<i32>} : memref<17x64xf32, #tpu.memory_space<vmem>>, vector<1x64xf32>,
    %c0_8 = arith.constant 0 : index
    %c0_9 = arith.constant 0 : index
    %8 = vector.load %arg1[%c0_8, %c0_9] : memref<32x16xf32, #tpu.memory_space<vmem>>, vector<32x16xf32>
    %c1 = arith.constant 1 : index
    %c0_10 = arith.constant 0 : index
    %9 = vector.load %arg8[%c1, %c0_10] : memref<33x16xf32, #tpu.memory_space<vmem>>, vector<32x16xf32>
    tpu.vector_store %arg8[%c1, %c0_10], %8 {strides = array<i32>} : memref<33x16xf32, #tpu.memory_space<vmem>>, vector<32x16xf32>,
    %c0_11 = arith.constant 0 : index
    %c0_12 = arith.constant 0 : index
    %10 = vector.load %arg6[%c0_11, %c0_12] : memref<4x64xf32, #tpu.memory_space<vmem>>, vector<1x64xf32>
    %c0_13 = arith.constant 0 : index
    %c0_14 = arith.constant 0 : index
    %11 = tpu.strided_load %arg8[%c0_13, %c0_14] {strides = array<i32: 2, 1>} : memref<33x16xf32, #tpu.memory_space<vmem>>, vector<16x16xf32>
    %c0_15 = arith.constant 0 : index
    %c0_16 = arith.constant 0 : index
    %c0_17 = arith.constant 0 : index
    %12 = vector.load %arg2[%c0_15, %c0_16, %c0_17] : memref<3x16x64xf32, #tpu.memory_space<vmem>>, vector<1x16x64xf32>
    %13 = vector.shape_cast %12 : vector<1x16x64xf32> to vector<16x64xf32>
    %cst_18 = arith.constant dense<0.000000e+00> : vector<16x64xf32>
    %14 = tpu.matmul %11, %13, %cst_18 {dimension_numbers = #tpu.dot_dimension_numbers<[1], [0], [0], [1], [0, 0, 1, 1], [], []>} : vector<16x16xf32>, vector<16x64xf32>, vector<16x64xf32> -> vector<16x64xf32>
    %c1_19 = arith.constant 1 : index
    %c0_20 = arith.constant 0 : index
    %15 = tpu.strided_load %arg8[%c1_19, %c0_20] {strides = array<i32: 2, 1>} : memref<33x16xf32, #tpu.memory_space<vmem>>, vector<16x16xf32>
    %c1_21 = arith.constant 1 : index
    %c0_22 = arith.constant 0 : index
    %c0_23 = arith.constant 0 : index
    %16 = vector.load %arg2[%c1_21, %c0_22, %c0_23] : memref<3x16x64xf32, #tpu.memory_space<vmem>>, vector<1x16x64xf32>
    %17 = vector.shape_cast %16 : vector<1x16x64xf32> to vector<16x64xf32>
    %cst_24 = arith.constant dense<0.000000e+00> : vector<16x64xf32>
    %18 = tpu.matmul %15, %17, %cst_24 {dimension_numbers = #tpu.dot_dimension_numbers<[1], [0], [0], [1], [0, 0, 1, 1], [], []>} : vector<16x16xf32>, vector<16x64xf32>, vector<16x64xf32> -> vector<16x64xf32>
    %c2 = arith.constant 2 : index
    %c0_25 = arith.constant 0 : index
    %19 = tpu.strided_load %arg8[%c2, %c0_25] {strides = array<i32: 2, 1>} : memref<33x16xf32, #tpu.memory_space<vmem>>, vector<16x16xf32>
    %c2_26 = arith.constant 2 : index
    %c0_27 = arith.constant 0 : index
    %c0_28 = arith.constant 0 : index
    %20 = vector.load %arg2[%c2_26, %c0_27, %c0_28] : memref<3x16x64xf32, #tpu.memory_space<vmem>>, vector<1x16x64xf32>
    %21 = vector.shape_cast %20 : vector<1x16x64xf32> to vector<16x64xf32>
    %cst_29 = arith.constant dense<0.000000e+00> : vector<16x64xf32>
    %22 = tpu.matmul %19, %21, %cst_29 {dimension_numbers = #tpu.dot_dimension_numbers<[1], [0], [0], [1], [0, 0, 1, 1], [], []>} : vector<16x16xf32>, vector<16x64xf32>, vector<16x64xf32> -> vector<16x64xf32>
    %23 = tpu.iota {dimensions = array<i32: 0>} : vector<16x64xi32>
    %c8_i32 = arith.constant 8 : i32
    %c0_i32 = arith.constant 0 : i32
    %24 = arith.cmpi eq, %c8_i32, %c0_i32 : i32
    %c1_i32 = arith.constant 1 : i32
    %25 = arith.select %24, %c1_i32, %c8_i32 : i32
    %26 = vector.broadcast %25 : i32 to vector<16x64xi32>
    %27 = arith.remsi %23, %26 : vector<16x64xi32>
    %c0_i32_30 = arith.constant 0 : i32
    %28 = vector.broadcast %c0_i32_30 : i32 to vector<16x64xi32>
    %29 = arith.cmpi ne, %27, %28 : vector<16x64xi32>
    %c0_i32_31 = arith.constant 0 : i32
    %30 = vector.broadcast %c0_i32_31 : i32 to vector<16x64xi32>
    %31 = arith.cmpi slt, %27, %30 : vector<16x64xi32>
    %c0_i32_32 = arith.constant 0 : i32
    %32 = arith.cmpi slt, %25, %c0_i32_32 : i32
    %33 = vector.broadcast %32 : i1 to vector<16x64xi1>
    %34 = vector.broadcast %33 : vector<16x64xi1> to vector<16x64xi1>
    %35 = arith.xori %31, %34 : vector<16x64xi1>
    %36 = arith.andi %35, %29 : vector<16x64xi1>
    %37 = vector.broadcast %25 : i32 to vector<16x64xi32>
    %38 = arith.addi %27, %37 : vector<16x64xi32>
    %39 = arith.select %36, %38, %27 : vector<16x64xi1>, vector<16x64xi32>
    %c0_i32_33 = arith.constant 0 : i32
    %40 = vector.broadcast %c0_i32_33 : i32 to vector<16x64xi32>
    %41 = arith.cmpi ne, %39, %40 : vector<16x64xi32>
    %cst_34 = arith.constant 0.000000e+00 : f32
    %42 = vector.broadcast %cst_34 : f32 to vector<16x64xf32>
    %43 = arith.select %41, %14, %42 : vector<16x64xi1>, vector<16x64xf32>
    %44 = arith.addf %43, %18 : vector<16x64xf32>
    %45 = arith.addf %44, %22 : vector<16x64xf32>
    %46 = vector.broadcast %10 : vector<1x64xf32> to vector<16x64xf32>
    %47 = arith.addf %45, %46 : vector<16x64xf32>
    %cst_35 = arith.constant 0.000000e+00 : f32
    %48 = vector.broadcast %cst_35 : f32 to vector<16x64xf32>
    %49 = arith.maximumf %47, %48 : vector<16x64xf32>
    %c1_36 = arith.constant 1 : index
    %c0_37 = arith.constant 0 : index
    %50 = vector.load %arg9[%c1_36, %c0_37] : memref<17x64xf32, #tpu.memory_space<vmem>>, vector<16x64xf32>
    tpu.vector_store %arg9[%c1_36, %c0_37], %49 {strides = array<i32>} : memref<17x64xf32, #tpu.memory_space<vmem>>, vector<16x64xf32>,
    %c1_38 = arith.constant 1 : index
    %c0_39 = arith.constant 0 : index
    %51 = vector.load %arg6[%c1_38, %c0_39] : memref<4x64xf32, #tpu.memory_space<vmem>>, vector<1x64xf32>
    %c0_40 = arith.constant 0 : index
    %c0_41 = arith.constant 0 : index
    %52 = tpu.strided_load %arg9[%c0_40, %c0_41] {strides = array<i32: 2, 1>} : memref<17x64xf32, #tpu.memory_space<vmem>>, vector<8x64xf32>
    %c0_42 = arith.constant 0 : index
    %c0_43 = arith.constant 0 : index
    %c0_44 = arith.constant 0 : index
    %53 = vector.load %arg3[%c0_42, %c0_43, %c0_44] : memref<3x64x64xf32, #tpu.memory_space<vmem>>, vector<1x64x64xf32>
    %54 = vector.shape_cast %53 : vector<1x64x64xf32> to vector<64x64xf32>
    %cst_45 = arith.constant dense<0.000000e+00> : vector<8x64xf32>
    %55 = tpu.matmul %52, %54, %cst_45 {dimension_numbers = #tpu.dot_dimension_numbers<[1], [0], [0], [1], [0, 0, 1, 1], [], []>} : vector<8x64xf32>, vector<64x64xf32>, vector<8x64xf32> -> vector<8x64xf32>
    %c1_46 = arith.constant 1 : index
    %c0_47 = arith.constant 0 : index
    %56 = tpu.strided_load %arg9[%c1_46, %c0_47] {strides = array<i32: 2, 1>} : memref<17x64xf32, #tpu.memory_space<vmem>>, vector<8x64xf32>
    %c1_48 = arith.constant 1 : index
    %c0_49 = arith.constant 0 : index
    %c0_50 = arith.constant 0 : index
    %57 = vector.load %arg3[%c1_48, %c0_49, %c0_50] : memref<3x64x64xf32, #tpu.memory_space<vmem>>, vector<1x64x64xf32>
    %58 = vector.shape_cast %57 : vector<1x64x64xf32> to vector<64x64xf32>
    %cst_51 = arith.constant dense<0.000000e+00> : vector<8x64xf32>
    %59 = tpu.matmul %56, %58, %cst_51 {dimension_numbers = #tpu.dot_dimension_numbers<[1], [0], [0], [1], [0, 0, 1, 1], [], []>} : vector<8x64xf32>, vector<64x64xf32>, vector<8x64xf32> -> vector<8x64xf32>
    %c2_52 = arith.constant 2 : index
    %c0_53 = arith.constant 0 : index
    %60 = tpu.strided_load %arg9[%c2_52, %c0_53] {strides = array<i32: 2, 1>} : memref<17x64xf32, #tpu.memory_space<vmem>>, vector<8x64xf32>
    %c2_54 = arith.constant 2 : index
    %c0_55 = arith.constant 0 : index
    %c0_56 = arith.constant 0 : index
    %61 = vector.load %arg3[%c2_54, %c0_55, %c0_56] : memref<3x64x64xf32, #tpu.memory_space<vmem>>, vector<1x64x64xf32>
    %62 = vector.shape_cast %61 : vector<1x64x64xf32> to vector<64x64xf32>
    %cst_57 = arith.constant dense<0.000000e+00> : vector<8x64xf32>
    %63 = tpu.matmul %60, %62, %cst_57 {dimension_numbers = #tpu.dot_dimension_numbers<[1], [0], [0], [1], [0, 0, 1, 1], [], []>} : vector<8x64xf32>, vector<64x64xf32>, vector<8x64xf32> -> vector<8x64xf32>
    %64 = tpu.iota {dimensions = array<i32: 0>} : vector<8x64xi32>
    %c4_i32 = arith.constant 4 : i32
    %c0_i32_58 = arith.constant 0 : i32
    %65 = arith.cmpi eq, %c4_i32, %c0_i32_58 : i32
    %c1_i32_59 = arith.constant 1 : i32
    %66 = arith.select %65, %c1_i32_59, %c4_i32 : i32
    %67 = vector.broadcast %66 : i32 to vector<8x64xi32>
    %68 = arith.remsi %64, %67 : vector<8x64xi32>
    %c0_i32_60 = arith.constant 0 : i32
    %69 = vector.broadcast %c0_i32_60 : i32 to vector<8x64xi32>
    %70 = arith.cmpi ne, %68, %69 : vector<8x64xi32>
    %c0_i32_61 = arith.constant 0 : i32
    %71 = vector.broadcast %c0_i32_61 : i32 to vector<8x64xi32>
    %72 = arith.cmpi slt, %68, %71 : vector<8x64xi32>
    %c0_i32_62 = arith.constant 0 : i32
    %73 = arith.cmpi slt, %66, %c0_i32_62 : i32
    %74 = vector.broadcast %73 : i1 to vector<8x64xi1>
    %75 = vector.broadcast %74 : vector<8x64xi1> to vector<8x64xi1>
    %76 = arith.xori %72, %75 : vector<8x64xi1>
    %77 = arith.andi %76, %70 : vector<8x64xi1>
    %78 = vector.broadcast %66 : i32 to vector<8x64xi32>
    %79 = arith.addi %68, %78 : vector<8x64xi32>
    %80 = arith.select %77, %79, %68 : vector<8x64xi1>, vector<8x64xi32>
    %c0_i32_63 = arith.constant 0 : i32
    %81 = vector.broadcast %c0_i32_63 : i32 to vector<8x64xi32>
    %82 = arith.cmpi ne, %80, %81 : vector<8x64xi32>
    %cst_64 = arith.constant 0.000000e+00 : f32
    %83 = vector.broadcast %cst_64 : f32 to vector<8x64xf32>
    %84 = arith.select %82, %55, %83 : vector<8x64xi1>, vector<8x64xf32>
    %85 = arith.addf %84, %59 : vector<8x64xf32>
    %86 = arith.addf %85, %63 : vector<8x64xf32>
    %87 = vector.broadcast %51 : vector<1x64xf32> to vector<8x64xf32>
    %88 = arith.addf %86, %87 : vector<8x64xf32>
    %cst_65 = arith.constant 0.000000e+00 : f32
    %89 = vector.broadcast %cst_65 : f32 to vector<8x64xf32>
    %90 = arith.maximumf %88, %89 : vector<8x64xf32>
    %c0_66 = arith.constant 0 : index
    %c0_67 = arith.constant 0 : index
    %91 = vector.load %arg10[%c0_66, %c0_67] : memref<9x64xf32, #tpu.memory_space<vmem>>, vector<8x64xf32>
    tpu.vector_store %arg10[%c0_66, %c0_67], %90 {strides = array<i32>} : memref<9x64xf32, #tpu.memory_space<vmem>>, vector<8x64xf32>,
    %c2_68 = arith.constant 2 : index
    %c0_69 = arith.constant 0 : index
    %92 = vector.load %arg6[%c2_68, %c0_69] : memref<4x64xf32, #tpu.memory_space<vmem>>, vector<1x64xf32>
    %c0_70 = arith.constant 0 : index
    %c0_71 = arith.constant 0 : index
    %93 = vector.load %arg10[%c0_70, %c0_71] : memref<9x64xf32, #tpu.memory_space<vmem>>, vector<8x64xf32>
    %c1_72 = arith.constant 1 : index
    %c0_73 = arith.constant 0 : index
    %94 = vector.load %arg10[%c1_72, %c0_73] : memref<9x64xf32, #tpu.memory_space<vmem>>, vector<8x64xf32>
    %c0_74 = arith.constant 0 : index
    %c0_75 = arith.constant 0 : index
    %c0_76 = arith.constant 0 : index
    %95 = vector.load %arg4[%c0_74, %c0_75, %c0_76] : memref<3x64x64xf32, #tpu.memory_space<vmem>>, vector<1x64x64xf32>
    %96 = vector.shape_cast %95 : vector<1x64x64xf32> to vector<64x64xf32>
    %cst_77 = arith.constant dense<0.000000e+00> : vector<8x64xf32>
    %97 = tpu.matmul %93, %96, %cst_77 {dimension_numbers = #tpu.dot_dimension_numbers<[1], [0], [0], [1], [0, 0, 1, 1], [], []>} : vector<8x64xf32>, vector<64x64xf32>, vector<8x64xf32> -> vector<8x64xf32>
    %c1_78 = arith.constant 1 : index
    %c0_79 = arith.constant 0 : index
    %c0_80 = arith.constant 0 : index
    %98 = vector.load %arg4[%c1_78, %c0_79, %c0_80] : memref<3x64x64xf32, #tpu.memory_space<vmem>>, vector<1x64x64xf32>
    %99 = vector.shape_cast %98 : vector<1x64x64xf32> to vector<64x64xf32>
    %cst_81 = arith.constant dense<0.000000e+00> : vector<8x64xf32>
    %100 = tpu.matmul %93, %99, %cst_81 {dimension_numbers = #tpu.dot_dimension_numbers<[1], [0], [0], [1], [0, 0, 1, 1], [], []>} : vector<8x64xf32>, vector<64x64xf32>, vector<8x64xf32> -> vector<8x64xf32>
    %c2_82 = arith.constant 2 : index
    %c0_83 = arith.constant 0 : index
    %c0_84 = arith.constant 0 : index
    %101 = vector.load %arg4[%c2_82, %c0_83, %c0_84] : memref<3x64x64xf32, #tpu.memory_space<vmem>>, vector<1x64x64xf32>
    %102 = vector.shape_cast %101 : vector<1x64x64xf32> to vector<64x64xf32>
    %cst_85 = arith.constant dense<0.000000e+00> : vector<8x64xf32>
    %103 = tpu.matmul %94, %102, %cst_85 {dimension_numbers = #tpu.dot_dimension_numbers<[1], [0], [0], [1], [0, 0, 1, 1], [], []>} : vector<8x64xf32>, vector<64x64xf32>, vector<8x64xf32> -> vector<8x64xf32>
    %104 = tpu.iota {dimensions = array<i32: 0>} : vector<8x64xi32>
    %c4_i32_86 = arith.constant 4 : i32
    %c0_i32_87 = arith.constant 0 : i32
    %105 = arith.cmpi eq, %c4_i32_86, %c0_i32_87 : i32
    %c1_i32_88 = arith.constant 1 : i32
    %106 = arith.select %105, %c1_i32_88, %c4_i32_86 : i32
    %107 = vector.broadcast %106 : i32 to vector<8x64xi32>
    %108 = arith.remsi %104, %107 : vector<8x64xi32>
    %c0_i32_89 = arith.constant 0 : i32
    %109 = vector.broadcast %c0_i32_89 : i32 to vector<8x64xi32>
    %110 = arith.cmpi ne, %108, %109 : vector<8x64xi32>
    %c0_i32_90 = arith.constant 0 : i32
    %111 = vector.broadcast %c0_i32_90 : i32 to vector<8x64xi32>
    %112 = arith.cmpi slt, %108, %111 : vector<8x64xi32>
    %c0_i32_91 = arith.constant 0 : i32
    %113 = arith.cmpi slt, %106, %c0_i32_91 : i32
    %114 = vector.broadcast %113 : i1 to vector<8x64xi1>
    %115 = vector.broadcast %114 : vector<8x64xi1> to vector<8x64xi1>
    %116 = arith.xori %112, %115 : vector<8x64xi1>
    %117 = arith.andi %116, %110 : vector<8x64xi1>
    %118 = vector.broadcast %106 : i32 to vector<8x64xi32>
    %119 = arith.addi %108, %118 : vector<8x64xi32>
    %120 = arith.select %117, %119, %108 : vector<8x64xi1>, vector<8x64xi32>
    %c3_i32 = arith.constant 3 : i32
    %121 = vector.broadcast %c3_i32 : i32 to vector<8x64xi32>
    %122 = arith.cmpi ne, %120, %121 : vector<8x64xi32>
    %cst_92 = arith.constant 0.000000e+00 : f32
    %123 = vector.broadcast %cst_92 : f32 to vector<8x64xf32>
    %124 = arith.select %122, %103, %123 : vector<8x64xi1>, vector<8x64xf32>
    %125 = vector.broadcast %92 : vector<1x64xf32> to vector<8x64xf32>
    %126 = arith.addf %97, %125 : vector<8x64xf32>
    %127 = arith.addf %100, %124 : vector<8x64xf32>
    %128 = vector.broadcast %92 : vector<1x64xf32> to vector<8x64xf32>
    %129 = arith.addf %127, %128 : vector<8x64xf32>
    %cst_93 = arith.constant 0.000000e+00 : f32
    %130 = vector.broadcast %cst_93 : f32 to vector<8x64xf32>
    %131 = arith.maximumf %126, %130 : vector<8x64xf32>
    %c0_94 = arith.constant 0 : index
    %c0_95 = arith.constant 0 : index
    %132 = tpu.strided_load %arg11[%c0_94, %c0_95] {strides = array<i32: 2, 1>} : memref<17x64xf32, #tpu.memory_space<vmem>>, vector<8x64xf32>
    tpu.strided_store %arg11[%c0_94, %c0_95], %131 {strides = array<i32: 2, 1>} : memref<17x64xf32, #tpu.memory_space<vmem>>, vector<8x64xf32>
    %cst_96 = arith.constant 0.000000e+00 : f32
    %133 = vector.broadcast %cst_96 : f32 to vector<8x64xf32>
    %134 = arith.maximumf %129, %133 : vector<8x64xf32>
    %c1_97 = arith.constant 1 : index
    %c0_98 = arith.constant 0 : index
    %135 = tpu.strided_load %arg11[%c1_97, %c0_98] {strides = array<i32: 2, 1>} : memref<17x64xf32, #tpu.memory_space<vmem>>, vector<8x64xf32>
    tpu.strided_store %arg11[%c1_97, %c0_98], %134 {strides = array<i32: 2, 1>} : memref<17x64xf32, #tpu.memory_space<vmem>>, vector<8x64xf32>
    %c3 = arith.constant 3 : index
    %c0_99 = arith.constant 0 : index
    %136 = vector.load %arg6[%c3, %c0_99] : memref<4x64xf32, #tpu.memory_space<vmem>>, vector<1x16xf32>
    %c0_100 = arith.constant 0 : index
    %c0_101 = arith.constant 0 : index
    %137 = vector.load %arg11[%c0_100, %c0_101] : memref<17x64xf32, #tpu.memory_space<vmem>>, vector<16x64xf32>
    %c1_102 = arith.constant 1 : index
    %c0_103 = arith.constant 0 : index
    %138 = vector.load %arg11[%c1_102, %c0_103] : memref<17x64xf32, #tpu.memory_space<vmem>>, vector<16x64xf32>
    %c0_104 = arith.constant 0 : index
    %c0_105 = arith.constant 0 : index
    %c0_106 = arith.constant 0 : index
    %139 = vector.load %arg5[%c0_104, %c0_105, %c0_106] : memref<3x64x16xf32, #tpu.memory_space<vmem>>, vector<1x64x16xf32>
    %140 = vector.shape_cast %139 : vector<1x64x16xf32> to vector<64x16xf32>
    %cst_107 = arith.constant dense<0.000000e+00> : vector<16x16xf32>
    %141 = tpu.matmul %137, %140, %cst_107 {dimension_numbers = #tpu.dot_dimension_numbers<[1], [0], [0], [1], [0, 0, 1, 1], [], []>} : vector<16x64xf32>, vector<64x16xf32>, vector<16x16xf32> -> vector<16x16xf32>
    %c1_108 = arith.constant 1 : index
    %c0_109 = arith.constant 0 : index
    %c0_110 = arith.constant 0 : index
    %142 = vector.load %arg5[%c1_108, %c0_109, %c0_110] : memref<3x64x16xf32, #tpu.memory_space<vmem>>, vector<1x64x16xf32>
    %143 = vector.shape_cast %142 : vector<1x64x16xf32> to vector<64x16xf32>
    %cst_111 = arith.constant dense<0.000000e+00> : vector<16x16xf32>
    %144 = tpu.matmul %137, %143, %cst_111 {dimension_numbers = #tpu.dot_dimension_numbers<[1], [0], [0], [1], [0, 0, 1, 1], [], []>} : vector<16x64xf32>, vector<64x16xf32>, vector<16x16xf32> -> vector<16x16xf32>
    %c2_112 = arith.constant 2 : index
    %c0_113 = arith.constant 0 : index
    %c0_114 = arith.constant 0 : index
    %145 = vector.load %arg5[%c2_112, %c0_113, %c0_114] : memref<3x64x16xf32, #tpu.memory_space<vmem>>, vector<1x64x16xf32>
    %146 = vector.shape_cast %145 : vector<1x64x16xf32> to vector<64x16xf32>
    %cst_115 = arith.constant dense<0.000000e+00> : vector<16x16xf32>
    %147 = tpu.matmul %138, %146, %cst_115 {dimension_numbers = #tpu.dot_dimension_numbers<[1], [0], [0], [1], [0, 0, 1, 1], [], []>} : vector<16x64xf32>, vector<64x16xf32>, vector<16x16xf32> -> vector<16x16xf32>
    %148 = tpu.iota {dimensions = array<i32: 0>} : vector<16x16xi32>
    %c8_i32_116 = arith.constant 8 : i32
    %c0_i32_117 = arith.constant 0 : i32
    %149 = arith.cmpi eq, %c8_i32_116, %c0_i32_117 : i32
    %c1_i32_118 = arith.constant 1 : i32
    %150 = arith.select %149, %c1_i32_118, %c8_i32_116 : i32
    %151 = vector.broadcast %150 : i32 to vector<16x16xi32>
    %152 = arith.remsi %148, %151 : vector<16x16xi32>
    %c0_i32_119 = arith.constant 0 : i32
    %153 = vector.broadcast %c0_i32_119 : i32 to vector<16x16xi32>
    %154 = arith.cmpi ne, %152, %153 : vector<16x16xi32>
    %c0_i32_120 = arith.constant 0 : i32
    %155 = vector.broadcast %c0_i32_120 : i32 to vector<16x16xi32>
    %156 = arith.cmpi slt, %152, %155 : vector<16x16xi32>
    %c0_i32_121 = arith.constant 0 : i32
    %157 = arith.cmpi slt, %150, %c0_i32_121 : i32
    %158 = vector.broadcast %157 : i1 to vector<16x16xi1>
    %159 = vector.broadcast %158 : vector<16x16xi1> to vector<16x16xi1>
    %160 = arith.xori %156, %159 : vector<16x16xi1>
    %161 = arith.andi %160, %154 : vector<16x16xi1>
    %162 = vector.broadcast %150 : i32 to vector<16x16xi32>
    %163 = arith.addi %152, %162 : vector<16x16xi32>
    %164 = arith.select %161, %163, %152 : vector<16x16xi1>, vector<16x16xi32>
    %c7_i32 = arith.constant 7 : i32
    %165 = vector.broadcast %c7_i32 : i32 to vector<16x16xi32>
    %166 = arith.cmpi ne, %164, %165 : vector<16x16xi32>
    %cst_122 = arith.constant 0.000000e+00 : f32
    %167 = vector.broadcast %cst_122 : f32 to vector<16x16xf32>
    %168 = arith.select %166, %147, %167 : vector<16x16xi1>, vector<16x16xf32>
    %169 = vector.broadcast %136 : vector<1x16xf32> to vector<16x16xf32>
    %170 = arith.addf %141, %169 : vector<16x16xf32>
    %171 = arith.addf %144, %168 : vector<16x16xf32>
    %172 = vector.broadcast %136 : vector<1x16xf32> to vector<16x16xf32>
    %173 = arith.addf %171, %172 : vector<16x16xf32>
    %174 = math.tanh %170 : vector<16x16xf32>
    %c0_123 = arith.constant 0 : index
    %c0_124 = arith.constant 0 : index
    %175 = tpu.strided_load %arg7[%c0_123, %c0_124] {strides = array<i32: 2, 1>} : memref<32x16xf32, #tpu.memory_space<vmem>>, vector<16x16xf32>
    tpu.strided_store %arg7[%c0_123, %c0_124], %174 {strides = array<i32: 2, 1>} : memref<32x16xf32, #tpu.memory_space<vmem>>, vector<16x16xf32>
    %176 = math.tanh %173 : vector<16x16xf32>
    %c1_125 = arith.constant 1 : index
    %c0_126 = arith.constant 0 : index
    %177 = tpu.strided_load %arg7[%c1_125, %c0_126] {strides = array<i32: 2, 1>} : memref<32x16xf32, #tpu.memory_space<vmem>>, vector<16x16xf32>
    tpu.strided_store %arg7[%c1_125, %c0_126], %176 {strides = array<i32: 2, 1>} : memref<32x16xf32, #tpu.memory_space<vmem>>, vector<16x16xf32>
    return
  }
  func.func @transform_0(%arg0: i32) -> (i32, i32) {
    %c0_i32 = arith.constant 0 : i32
    %c0_i32_0 = arith.constant 0 : i32
    return %arg0, %c0_i32 : i32, i32
  }
  func.func @transform_1(%arg0: i32) -> (i32, i32, i32) {
    %c0_i32 = arith.constant 0 : i32
    %c0_i32_0 = arith.constant 0 : i32
    %c0_i32_1 = arith.constant 0 : i32
    %c0_i32_2 = arith.constant 0 : i32
    return %c0_i32, %c0_i32_0, %c0_i32_1 : i32, i32, i32
  }
  func.func @transform_2(%arg0: i32) -> (i32, i32, i32) {
    %c0_i32 = arith.constant 0 : i32
    %c0_i32_0 = arith.constant 0 : i32
    %c0_i32_1 = arith.constant 0 : i32
    %c0_i32_2 = arith.constant 0 : i32
    return %c0_i32, %c0_i32_0, %c0_i32_1 : i32, i32, i32
  }
  func.func @transform_3(%arg0: i32) -> (i32, i32, i32) {
    %c0_i32 = arith.constant 0 : i32
    %c0_i32_0 = arith.constant 0 : i32
    %c0_i32_1 = arith.constant 0 : i32
    %c0_i32_2 = arith.constant 0 : i32
    return %c0_i32, %c0_i32_0, %c0_i32_1 : i32, i32, i32
  }
  func.func @transform_4(%arg0: i32) -> (i32, i32, i32) {
    %c0_i32 = arith.constant 0 : i32
    %c0_i32_0 = arith.constant 0 : i32
    %c0_i32_1 = arith.constant 0 : i32
    %c0_i32_2 = arith.constant 0 : i32
    return %c0_i32, %c0_i32_0, %c0_i32_1 : i32, i32, i32
  }
  func.func @transform_5(%arg0: i32) -> (i32, i32) {
    %c0_i32 = arith.constant 0 : i32
    %c0_i32_0 = arith.constant 0 : i32
    %c0_i32_1 = arith.constant 0 : i32
    return %c0_i32, %c0_i32_0 : i32, i32
  }
  func.func @transform_6(%arg0: i32) -> (i32, i32) {
    %c0_i32 = arith.constant 0 : i32
    %c0_i32_0 = arith.constant 0 : i32
    return %arg0, %c0_i32 : i32, i32
  }
}

</mosaic_0001>

<llo_original>
// kernel: autoencoder_forward.1
$region0: #{autoencoder_forward.1}
  #allocation0 [shape = 'u32[]', space=smem, size = 0x4, offset = 0x4, fixed_abs, tag = 'smem constant byte address 0x4 - core index']
  #allocation1 [shape = 'u32[72,128]{1,0:T(1,128)}', space=vmem, size = 0x9000, scoped, tag = 'internal scratch']
  #allocation2 [shape = 'f32[33,16]{1,0:T(8,128)}', space=vmem, size = 0x5000, scoped, tag = 'scratch operand']
  #allocation3 [shape = 'f32[17,64]{1,0:T(8,128)}', space=vmem, size = 0x3000, scoped, tag = 'scratch operand']
  #allocation4 [shape = 'f32[9,64]{1,0:T(8,128)}', space=vmem, size = 0x2000, scoped, tag = 'scratch operand']
  #allocation5 [shape = 'f32[17,64]{1,0:T(8,128)}', space=vmem, size = 0x3000, scoped, tag = 'scratch operand']
  %s0 = inlined_call_operand.hbm [shape: f32[32,16], index: 0, kind: input, shape index: {}]
  %s1 = inlined_call_operand.vmem [shape: f32[3,16,64], index: 1, kind: input, shape index: {}]
  %s2 = inlined_call_operand.vmem [shape: f32[3,64,64], index: 2, kind: input, shape index: {}]
  %s3 = inlined_call_operand.hbm [shape: f32[3,64,64], index: 3, kind: input, shape index: {}]
  %s4 = inlined_call_operand.vmem [shape: f32[3,64,16], index: 4, kind: input, shape index: {}]
  %s5 = inlined_call_operand.vmem [shape: f32[4,64], index: 5, kind: input, shape index: {}]
  %s6 = inlined_call_operand.hbm [shape: f32[32,16], index: 6, kind: output, shape index: {}]
  %s7 = sld [smem:[#allocation0]]
  $region42: #{autoencoder_forward.1} parent=0
    _
  %s9 = ssub.s32 1, %s7
  %s10 = scalar_select 0, %s9, %s7
  $region1: #{autoencoder_forward.1} parent=0
    #allocation6 [shape = 'u8[16384]{0}', space=vmem, size = 0x4000, scoped, tag = 'input window, operand 0, single buffered']
    #allocation7 [shape = 's32[1]{0}', space=sflag, size = 0x4, scoped, tag = 'scoped memory for autoencoder_forward.1']
    #allocation8 [shape = 's32[1]{0}', space=sflag, size = 0x4, scoped, tag = 'scoped memory for autoencoder_forward.1']
    #allocation9 [shape = 'u8[98304]{0}', space=vmem, size = 0x18000, scoped, tag = 'input window, operand 3, single buffered']
    #allocation10 [shape = 's32[1]{0}', space=sflag, size = 0x4, scoped, tag = 'scoped memory for autoencoder_forward.1']
    #allocation11 [shape = 'u8[16384]{0}', space=vmem, size = 0x4000, scoped, tag = 'output window, operand 0, single buffered']
    %11 = vsyncpa [#allocation7], 0
    %12 = vsyncpa [#allocation10], 0
    %13 = vsyncpa [#allocation8], 0
    // Predicated region
    $region2: #{autoencoder_forward.1} parent=1 // pred_check
      _
    $region3: #{autoencoder_forward.1} parent=1 // pred_check_branch
      %15 = sbr.rel (0) target = $region5
    $region4: #{autoencoder_forward.1} parent=1 // pred_region
      %17 = vsyncadd [#allocation7], 0
      %s18 = sshll.u32 %s0, 4
      %s19 = int_to_ptr.hbm [resolvable:$true] %s18
      %s20 = sshll.u32 [#allocation6], 4
      %s21 = int_to_ptr.vmem [resolvable:$true] %s20
      %26 = dma.hbm_to_vmem [thread:$0]  %s19, 512, %s21, [#allocation7], 128, 128, 8
    $region5: #{autoencoder_forward.1} parent=1 // pred_fallthru
      _
    // Predicated region
    $region6: #{autoencoder_forward.1} parent=1 // pred_check
      _
    $region7: #{autoencoder_forward.1} parent=1 // pred_check_branch
      %28 = sbr.rel (0) target = $region9
    $region8: #{autoencoder_forward.1} parent=1 // pred_region
      _
    $region9: #{autoencoder_forward.1} parent=1 // pred_fallthru
      _
    // Predicated region
    $region10: #{autoencoder_forward.1} parent=1 // pred_check
      _
    $region11: #{autoencoder_forward.1} parent=1 // pred_check_branch
      %30 = sbr.rel (0) target = $region13
    $region12: #{autoencoder_forward.1} parent=1 // pred_region
      _
    $region13: #{autoencoder_forward.1} parent=1 // pred_fallthru
      _
    // Predicated region
    $region14: #{autoencoder_forward.1} parent=1 // pred_check
      _
    $region15: #{autoencoder_forward.1} parent=1 // pred_check_branch
      %32 = sbr.rel (0) target = $region17
    $region16: #{autoencoder_forward.1} parent=1 // pred_region
      %34 = vsyncadd [#allocation10], 0
      %s35 = sshll.u32 %s3, 4
      %s36 = int_to_ptr.hbm [resolvable:$true] %s35
      %s37 = sshll.u32 [#allocation9], 4
      %s38 = int_to_ptr.vmem [resolvable:$true] %s37
      %43 = dma.hbm_to_vmem [thread:$0]  %s36, 3072, %s38, [#allocation10], 128, 128, 8
    $region17: #{autoencoder_forward.1} parent=1 // pred_fallthru
      _
    // Predicated region
    $region18: #{autoencoder_forward.1} parent=1 // pred_check
      _
    $region19: #{autoencoder_forward.1} parent=1 // pred_check_branch
      %45 = sbr.rel (0) target = $region21
    $region20: #{autoencoder_forward.1} parent=1 // pred_region
      _
    $region21: #{autoencoder_forward.1} parent=1 // pred_fallthru
      _
    // Predicated region
    $region22: #{autoencoder_forward.1} parent=1 // pred_check
      _
    $region23: #{autoencoder_forward.1} parent=1 // pred_check_branch
      %47 = sbr.rel (0) target = $region25
    $region24: #{autoencoder_forward.1} parent=1 // pred_region
      _
    $region25: #{autoencoder_forward.1} parent=1 // pred_fallthru
      _
    // Predicated region
    $region26: #{autoencoder_forward.1} parent=1 // pred_check
      _
    $region27: #{autoencoder_forward.1} parent=1 // pred_check_branch
      %49 = sbr.rel (0) target = $region29
    $region28: #{autoencoder_forward.1} parent=1 // pred_region
      %51 = dma.done [#allocation7], 512
    $region29: #{autoencoder_forward.1} parent=1 // pred_fallthru
      _
    // Predicated region
    $region30: #{autoencoder_forward.1} parent=1 // pred_check
      _
    $region31: #{autoencoder_forward.1} parent=1 // pred_check_branch
      %53 = sbr.rel (0) target = $region33
    $region32: #{autoencoder_forward.1} parent=1 // pred_region
      %55 = dma.done [#allocation10], 3072
    $region33: #{autoencoder_forward.1} parent=1 // pred_fallthru
      _
    %vm56 = vcmask 122880
    %57 = vst.msk [vmem:[#allocation2] sm:$0x1] %vm56, 0.0
    %vm58 = vcmask 516096
    %59 = vst.msk [vmem:[#allocation3] sm:$0x1] %vm58, 0.0
    %60 = vst.msk [vmem:[#allocation4 + $0x8] sm:$0x1] %vm58, 0.0
    %61 = vst.msk [vmem:[#allocation5 + $0x10] sm:$0x1] %vm58, 0.0
    %v62 = vld [vmem:[#allocation6] sm:$0xff]
    %v63 = vld [vmem:[#allocation6 + $0x8] sm:$0xff]
    %v64 = vld [vmem:[#allocation6 + $0x10] sm:$0xff]
    %v65 = vld [vmem:[#allocation6 + $0x18] sm:$0xff]
    %vm66 = vcmask 130048
    %67 = vst.msk [vmem:[#allocation2 + $0x1] sm:$0xff] %vm66, %v62
    %68 = vst.msk [vmem:[#allocation2 + $0x9] sm:$0xff] %vm66, %v63
    %69 = vst.msk [vmem:[#allocation2 + $0x11] sm:$0xff] %vm66, %v64
    %70 = vst.msk [vmem:[#allocation2 + $0x19] sm:$0xff] %vm66, %v65
    %v71 = vld [vmem:[%s5] sm:$0x1]
    %v72 = vld [vmem:[#allocation2] ss:$2 sm:$0xff]
    %s73 = scalar_lea.vmem [#allocation2], 16
    %v74 = vld [vmem:[%s73] ss:$2 sm:$0xff]
    %v75 = vld [vmem:[%s1] sm:$0xff]
    %v76 = vld [vmem:[%s1 + $0x8] sm:$0xff]
    %v78 = vsel %vm66, %v72, 0
    %v81 = vsel %vm66, %v74, 0
    %83 = vmatpush.msra.mxu0 0.0
    %84 = vmatpush.msra.mxu0 0.0
    %85 = vmatpush.msra.mxu0 0.0
    %86 = vmatpush.msra.mxu0 0.0
    %87 = vmatpush.msra.mxu0 0.0
    %88 = vmatpush.msra.mxu0 0.0
    %89 = vmatpush.msra.mxu0 0.0
    %90 = vmatpush.msra.mxu0 0.0
    %91 = vmatpush.msra.mxu0 0.0
    %92 = vmatpush.msra.mxu0 0.0
    %93 = vmatpush.msra.mxu0 0.0
    %94 = vmatpush.msra.mxu0 0.0
    %95 = vmatpush.msra.mxu0 0.0
    %96 = vmatpush.msra.mxu0 0.0
    %97 = vmatpush.msra.mxu0 %v76
    %98 = vmatpush.msra.mxu0 %v75
    %99 = vmatmul.f32.gmra.mxu0 %v78
    %v100 = vpop.f32.mrf.mxu0
    %v101 = vadd.f32 0.0, %v100
    %102 = vmatmul.f32.gmra.mxu0 %v81
    %v103 = vpop.f32.mrf.mxu0
    %v104 = vadd.f32 0.0, %v103
    %105 = vdwg.mxu0
    %s106 = scalar_lea.vmem [#allocation2], 1
    %v107 = vld [vmem:[%s106] ss:$2 sm:$0xff]
    %s108 = scalar_lea.vmem [#allocation2], 17
    %v109 = vld [vmem:[%s108] ss:$2 sm:$0xff]
    %s110 = scalar_lea.vmem %s1, 16
    %v111 = vld [vmem:[%s110] sm:$0xff]
    %v112 = vld [vmem:[%s110 + $0x8] sm:$0xff]
    %v114 = vsel %vm66, %v107, 0
    %v117 = vsel %vm66, %v109, 0
    %119 = vmatpush.msra.mxu0 0.0
    %120 = vmatpush.msra.mxu0 0.0
    %121 = vmatpush.msra.mxu0 0.0
    %122 = vmatpush.msra.mxu0 0.0
    %123 = vmatpush.msra.mxu0 0.0
    %124 = vmatpush.msra.mxu0 0.0
    %125 = vmatpush.msra.mxu0 0.0
    %126 = vmatpush.msra.mxu0 0.0
    %127 = vmatpush.msra.mxu0 0.0
    %128 = vmatpush.msra.mxu0 0.0
    %129 = vmatpush.msra.mxu0 0.0
    %130 = vmatpush.msra.mxu0 0.0
    %131 = vmatpush.msra.mxu0 0.0
    %132 = vmatpush.msra.mxu0 0.0
    %133 = vmatpush.msra.mxu0 %v112
    %134 = vmatpush.msra.mxu0 %v111
    %135 = vmatmul.f32.gmra.mxu0 %v114
    %v136 = vpop.f32.mrf.mxu0
    %v137 = vadd.f32 0.0, %v136
    %138 = vmatmul.f32.gmra.mxu0 %v117
    %v139 = vpop.f32.mrf.mxu0
    %v140 = vadd.f32 0.0, %v139
    %141 = vdwg.mxu0
    %s142 = scalar_lea.vmem [#allocation2], 2
    %v143 = vld [vmem:[%s142] ss:$2 sm:$0xff]
    %s144 = scalar_lea.vmem [#allocation2], 18
    %v145 = vld [vmem:[%s144] ss:$2 sm:$0xff]
    %s146 = scalar_lea.vmem %s1, 32
    %v147 = vld [vmem:[%s146] sm:$0xff]
    %v148 = vld [vmem:[%s146 + $0x8] sm:$0xff]
    %v150 = vsel %vm66, %v143, 0
    %v153 = vsel %vm66, %v145, 0
    %155 = vmatpush.msra.mxu0 0.0
    %156 = vmatpush.msra.mxu0 0.0
    %157 = vmatpush.msra.mxu0 0.0
    %158 = vmatpush.msra.mxu0 0.0
    %159 = vmatpush.msra.mxu0 0.0
    %160 = vmatpush.msra.mxu0 0.0
    %161 = vmatpush.msra.mxu0 0.0
    %162 = vmatpush.msra.mxu0 0.0
    %163 = vmatpush.msra.mxu0 0.0
    %164 = vmatpush.msra.mxu0 0.0
    %165 = vmatpush.msra.mxu0 0.0
    %166 = vmatpush.msra.mxu0 0.0
    %167 = vmatpush.msra.mxu0 0.0
    %168 = vmatpush.msra.mxu0 0.0
    %169 = vmatpush.msra.mxu0 %v148
    %170 = vmatpush.msra.mxu0 %v147
    %171 = vmatmul.f32.gmra.mxu0 %v150
    %v172 = vpop.f32.mrf.mxu0
    %v173 = vadd.f32 0.0, %v172
    %174 = vmatmul.f32.gmra.mxu0 %v153
    %v175 = vpop.f32.mrf.mxu0
    %v176 = vadd.f32 0.0, %v175
    %177 = vdwg.mxu0
    %v178 = vlaneseq
    %v179 = vshrl.u32 %v178, 7
    %v180 = vadd.s32 %v179, 8
    %vm181 = vcmp.lt.s32.totalorder %v179, 0
    %v182 = vsub.s32 0, %v179
    %v183 = vsel %vm181, %v182, %v179
    %v184 = vshrl.u32 %v183, 3
    %v185 = vand.u32 %v183, 7
    %v186 = vsub.s32 0, %v185
    %v187 = vsel %vm181, %v186, %v185
    %vm188 = vcmp.lt.s32.totalorder %v180, 0
    %v189 = vsub.s32 0, %v180
    %v190 = vsel %vm188, %v189, %v180
    %v191 = vshrl.u32 %v190, 3
    %v192 = vand.u32 %v190, 7
    %v193 = vsub.s32 0, %v192
    %v194 = vsel %vm188, %v193, %v192
    %vm195 = vcmp.ne.s32.totalorder %v187, 0
    %vm196 = vcmp.ne.s32.totalorder %v194, 0
    %vm197 = vcmp.lt.s32.totalorder %v187, 0
    %vm198 = vcmp.lt.s32.totalorder %v194, 0
    %vm199 = vmand %vm197, %vm195
    %vm200 = vmand %vm198, %vm196
    %v201 = vadd.s32 %v187, 8
    %v202 = vadd.s32 %v194, 8
    %v203 = vsel %vm199, %v201, %v187
    %v204 = vsel %vm200, %v202, %v194
    %vm205 = vcmp.ne.s32.totalorder %v203, 0
    %vm206 = vcmp.ne.s32.totalorder %v204, 0
    %v207 = vsel %vm205, %v101, 0.0
    %v208 = vsel %vm206, %v104, 0.0
    %v209 = vadd.f32 %v207, %v137
    %v210 = vadd.f32 %v208, %v140
    %v211 = vadd.f32 %v209, %v173
    %v212 = vadd.f32 %v210, %v176
    %v213 = vperm.slane %v71, 0
    %v214 = vadd.f32 %v211, %v213
    %v215 = vadd.f32 %v212, %v213
    %v216 = vmax.f32 %v214, 0.0
    %v217 = vmax.f32 %v215, 0.0
    %vm218 = vcmask 523264
    %219 = vst.msk [vmem:[#allocation3 + $0x1] sm:$0xff] %vm218, %v216
    %220 = vst.msk [vmem:[#allocation3 + $0x9] sm:$0xff] %vm218, %v217
    %v221 = vld [vmem:[%s5 + $0x1] sm:$0x1]
    %v222 = vld [vmem:[#allocation3] ss:$2 sm:$0xff]
    %v223 = vld [vmem:[%s2] sm:$0xff]
    %v224 = vld [vmem:[%s2 + $0x8] sm:$0xff]
    %v225 = vld [vmem:[%s2 + $0x10] sm:$0xff]
    %v226 = vld [vmem:[%s2 + $0x18] sm:$0xff]
    %v227 = vld [vmem:[%s2 + $0x20] sm:$0xff]
    %v228 = vld [vmem:[%s2 + $0x28] sm:$0xff]
    %v229 = vld [vmem:[%s2 + $0x30] sm:$0xff]
    %v230 = vld [vmem:[%s2 + $0x38] sm:$0xff]
    %v232 = vsel %vm218, %v222, 0
    %234 = vmatpush.msra.mxu0 0.0
    %235 = vmatpush.msra.mxu0 0.0
    %236 = vmatpush.msra.mxu0 0.0
    %237 = vmatpush.msra.mxu0 0.0
    %238 = vmatpush.msra.mxu0 0.0
    %239 = vmatpush.msra.mxu0 0.0
    %240 = vmatpush.msra.mxu0 0.0
    %241 = vmatpush.msra.mxu0 0.0
    %242 = vmatpush.msra.mxu0 %v230
    %243 = vmatpush.msra.mxu0 %v229
    %244 = vmatpush.msra.mxu0 %v228
    %245 = vmatpush.msra.mxu0 %v227
    %246 = vmatpush.msra.mxu0 %v226
    %247 = vmatpush.msra.mxu0 %v225
    %248 = vmatpush.msra.mxu0 %v224
    %249 = vmatpush.msra.mxu0 %v223
    %250 = vmatmul.f32.gmra.mxu0 %v232
    %v251 = vpop.f32.mrf.mxu0
    %v252 = vadd.f32 0.0, %v251
    %253 = vdwg.mxu0
    %s254 = scalar_lea.vmem [#allocation3], 1
    %v255 = vld [vmem:[%s254] ss:$2 sm:$0xff]
    %s256 = scalar_lea.vmem %s2, 64
    %v257 = vld [vmem:[%s256] sm:$0xff]
    %v258 = vld [vmem:[%s256 + $0x8] sm:$0xff]
    %v259 = vld [vmem:[%s256 + $0x10] sm:$0xff]
    %v260 = vld [vmem:[%s256 + $0x18] sm:$0xff]
    %v261 = vld [vmem:[%s256 + $0x20] sm:$0xff]
    %v262 = vld [vmem:[%s256 + $0x28] sm:$0xff]
    %v263 = vld [vmem:[%s256 + $0x30] sm:$0xff]
    %v264 = vld [vmem:[%s256 + $0x38] sm:$0xff]
    %v266 = vsel %vm218, %v255, 0
    %268 = vmatpush.msra.mxu0 0.0
    %269 = vmatpush.msra.mxu0 0.0
    %270 = vmatpush.msra.mxu0 0.0
    %271 = vmatpush.msra.mxu0 0.0
    %272 = vmatpush.msra.mxu0 0.0
    %273 = vmatpush.msra.mxu0 0.0
    %274 = vmatpush.msra.mxu0 0.0
    %275 = vmatpush.msra.mxu0 0.0
    %276 = vmatpush.msra.mxu0 %v264
    %277 = vmatpush.msra.mxu0 %v263
    %278 = vmatpush.msra.mxu0 %v262
    %279 = vmatpush.msra.mxu0 %v261
    %280 = vmatpush.msra.mxu0 %v260
    %281 = vmatpush.msra.mxu0 %v259
    %282 = vmatpush.msra.mxu0 %v258
    %283 = vmatpush.msra.mxu0 %v257
    %284 = vmatmul.f32.gmra.mxu0 %v266
    %v285 = vpop.f32.mrf.mxu0
    %v286 = vadd.f32 0.0, %v285
    %287 = vdwg.mxu0
    %s288 = scalar_lea.vmem [#allocation3], 2
    %v289 = vld [vmem:[%s288] ss:$2 sm:$0xff]
    %s290 = scalar_lea.vmem %s2, 128
    %v291 = vld [vmem:[%s290] sm:$0xff]
    %v292 = vld [vmem:[%s290 + $0x8] sm:$0xff]
    %v293 = vld [vmem:[%s290 + $0x10] sm:$0xff]
    %v294 = vld [vmem:[%s290 + $0x18] sm:$0xff]
    %v295 = vld [vmem:[%s290 + $0x20] sm:$0xff]
    %v296 = vld [vmem:[%s290 + $0x28] sm:$0xff]
    %v297 = vld [vmem:[%s290 + $0x30] sm:$0xff]
    %v298 = vld [vmem:[%s290 + $0x38] sm:$0xff]
    %v300 = vsel %vm218, %v289, 0
    %302 = vmatpush.msra.mxu0 0.0
    %303 = vmatpush.msra.mxu0 0.0
    %304 = vmatpush.msra.mxu0 0.0
    %305 = vmatpush.msra.mxu0 0.0
    %306 = vmatpush.msra.mxu0 0.0
    %307 = vmatpush.msra.mxu0 0.0
    %308 = vmatpush.msra.mxu0 0.0
    %309 = vmatpush.msra.mxu0 0.0
    %310 = vmatpush.msra.mxu0 %v298
    %311 = vmatpush.msra.mxu0 %v297
    %312 = vmatpush.msra.mxu0 %v296
    %313 = vmatpush.msra.mxu0 %v295
    %314 = vmatpush.msra.mxu0 %v294
    %315 = vmatpush.msra.mxu0 %v293
    %316 = vmatpush.msra.mxu0 %v292
    %317 = vmatpush.msra.mxu0 %v291
    %318 = vmatmul.f32.gmra.mxu0 %v300
    %v319 = vpop.f32.mrf.mxu0
    %v320 = vadd.f32 0.0, %v319
    %321 = vdwg.mxu0
    %vm322 = vcmp.lt.s32.totalorder %v179, 0
    %v323 = vsub.s32 0, %v179
    %v324 = vsel %vm322, %v323, %v179
    %v325 = vshrl.u32 %v324, 2
    %v326 = vand.u32 %v324, 3
    %v327 = vsub.s32 0, %v326
    %v328 = vsel %vm322, %v327, %v326
    %vm329 = vcmp.ne.s32.totalorder %v328, 0
    %vm330 = vcmp.lt.s32.totalorder %v328, 0
    %vm331 = vmand %vm330, %vm329
    %v332 = vadd.s32 %v328, 4
    %v333 = vsel %vm331, %v332, %v328
    %vm334 = vcmp.ne.s32.totalorder %v333, 0
    %v335 = vsel %vm334, %v252, 0.0
    %v336 = vadd.f32 %v335, %v286
    %v337 = vadd.f32 %v336, %v320
    %v338 = vperm.slane %v221, 0
    %v339 = vadd.f32 %v337, %v338
    %v340 = vmax.f32 %v339, 0.0
    %341 = vst.msk [vmem:[#allocation4] sm:$0xff] %vm218, %v340
    %v342 = vld [vmem:[%s5 + $0x2] sm:$0x1]
    %v343 = vld [vmem:[#allocation4] sm:$0xff]
    %v344 = vld [vmem:[#allocation4 + $0x1] sm:$0xff]
    %v345 = vld [vmem:[#allocation9] sm:$0xff]
    %v346 = vld [vmem:[#allocation9 + $0x8] sm:$0xff]
    %v347 = vld [vmem:[#allocation9 + $0x10] sm:$0xff]
    %v348 = vld [vmem:[#allocation9 + $0x18] sm:$0xff]
    %v349 = vld [vmem:[#allocation9 + $0x20] sm:$0xff]
    %v350 = vld [vmem:[#allocation9 + $0x28] sm:$0xff]
    %v351 = vld [vmem:[#allocation9 + $0x30] sm:$0xff]
    %v352 = vld [vmem:[#allocation9 + $0x38] sm:$0xff]
    %s353 = scalar_lea.vmem [#allocation9], 64
    %v354 = vld [vmem:[%s353] sm:$0xff]
    %v355 = vld [vmem:[%s353 + $0x8] sm:$0xff]
    %v356 = vld [vmem:[%s353 + $0x10] sm:$0xff]
    %v357 = vld [vmem:[%s353 + $0x18] sm:$0xff]
    %v358 = vld [vmem:[%s353 + $0x20] sm:$0xff]
    %v359 = vld [vmem:[%s353 + $0x28] sm:$0xff]
    %v360 = vld [vmem:[%s353 + $0x30] sm:$0xff]
    %v361 = vld [vmem:[%s353 + $0x38] sm:$0xff]
    %s362 = scalar_lea.vmem [#allocation9], 128
    %v363 = vld [vmem:[%s362] sm:$0xff]
    %v364 = vld [vmem:[%s362 + $0x8] sm:$0xff]
    %v365 = vld [vmem:[%s362 + $0x10] sm:$0xff]
    %v366 = vld [vmem:[%s362 + $0x18] sm:$0xff]
    %v367 = vld [vmem:[%s362 + $0x20] sm:$0xff]
    %v368 = vld [vmem:[%s362 + $0x28] sm:$0xff]
    %v369 = vld [vmem:[%s362 + $0x30] sm:$0xff]
    %v370 = vld [vmem:[%s362 + $0x38] sm:$0xff]
    %v372 = vsel %vm218, %v344, 0
    %374 = vmatpush.msra.mxu0 0.0
    %375 = vmatpush.msra.mxu0 0.0
    %376 = vmatpush.msra.mxu0 0.0
    %377 = vmatpush.msra.mxu0 0.0
    %378 = vmatpush.msra.mxu0 0.0
    %379 = vmatpush.msra.mxu0 0.0
    %380 = vmatpush.msra.mxu0 0.0
    %381 = vmatpush.msra.mxu0 0.0
    %382 = vmatpush.msra.mxu0 %v370
    %383 = vmatpush.msra.mxu0 %v369
    %384 = vmatpush.msra.mxu0 %v368
    %385 = vmatpush.msra.mxu0 %v367
    %386 = vmatpush.msra.mxu0 %v366
    %387 = vmatpush.msra.mxu0 %v365
    %388 = vmatpush.msra.mxu0 %v364
    %389 = vmatpush.msra.mxu0 %v363
    %390 = vmatmul.f32.gmra.mxu0 %v372
    %v391 = vpop.f32.mrf.mxu0
    %v392 = vadd.f32 0.0, %v391
    %393 = vdwg.mxu0
    %vm394 = vcmp.ne.s32.totalorder %v333, 3
    %v395 = vsel %vm394, %v392, 0.0
    %v396 = vperm.slane %v342, 0
    %v398 = vsel %vm218, %v343, 0
    %400 = vmatpush.msra.mxu0 0.0
    %401 = vmatpush.msra.mxu0 0.0
    %402 = vmatpush.msra.mxu0 0.0
    %403 = vmatpush.msra.mxu0 0.0
    %404 = vmatpush.msra.mxu0 0.0
    %405 = vmatpush.msra.mxu0 0.0
    %406 = vmatpush.msra.mxu0 0.0
    %407 = vmatpush.msra.mxu0 0.0
    %408 = vmatpush.msra.mxu0 %v352
    %409 = vmatpush.msra.mxu0 %v351
    %410 = vmatpush.msra.mxu0 %v350
    %411 = vmatpush.msra.mxu0 %v349
    %412 = vmatpush.msra.mxu0 %v348
    %413 = vmatpush.msra.mxu0 %v347
    %414 = vmatpush.msra.mxu0 %v346
    %415 = vmatpush.msra.mxu0 %v345
    %416 = vmatmul.f32.gmra.mxu0 %v398
    %v417 = vpop.f32.mrf.mxu0
    %v418 = vadd.f32 %v396, %v417
    %419 = vdwg.mxu0
    %420 = vmatpush.msra.mxu0 0.0
    %421 = vmatpush.msra.mxu0 0.0
    %422 = vmatpush.msra.mxu0 0.0
    %423 = vmatpush.msra.mxu0 0.0
    %424 = vmatpush.msra.mxu0 0.0
    %425 = vmatpush.msra.mxu0 0.0
    %426 = vmatpush.msra.mxu0 0.0
    %427 = vmatpush.msra.mxu0 0.0
    %428 = vmatpush.msra.mxu0 %v361
    %429 = vmatpush.msra.mxu0 %v360
    %430 = vmatpush.msra.mxu0 %v359
    %431 = vmatpush.msra.mxu0 %v358
    %432 = vmatpush.msra.mxu0 %v357
    %433 = vmatpush.msra.mxu0 %v356
    %434 = vmatpush.msra.mxu0 %v355
    %435 = vmatpush.msra.mxu0 %v354
    %436 = vmatmul.f32.gmra.mxu0 %v398
    %v437 = vpop.f32.mrf.mxu0
    %v438 = vadd.f32 %v395, %v437
    %439 = vdwg.mxu0
    %v440 = vadd.f32 %v438, %v396
    %v441 = vmax.f32 %v418, 0.0
    %442 = vst [vmem:[#allocation5] ss:$2 sm:$0xff] %v441
    %v443 = vmax.f32 %v440, 0.0
    %s444 = scalar_lea.vmem [#allocation5], 1
    %445 = vst [vmem:[%s444] ss:$2 sm:$0xff] %v443
    %v446 = vld [vmem:[%s5 + $0x3] sm:$0x1]
    %v447 = vld [vmem:[#allocation5] sm:$0xff]
    %v448 = vld [vmem:[#allocation5 + $0x8] sm:$0xff]
    %v449 = vld [vmem:[#allocation5 + $0x1] sm:$0xff]
    %v450 = vld [vmem:[#allocation5 + $0x9] sm:$0xff]
    %v451 = vld [vmem:[%s4] sm:$0xff]
    %v452 = vld [vmem:[%s4 + $0x8] sm:$0xff]
    %v453 = vld [vmem:[%s4 + $0x10] sm:$0xff]
    %v454 = vld [vmem:[%s4 + $0x18] sm:$0xff]
    %v455 = vld [vmem:[%s4 + $0x20] sm:$0xff]
    %v456 = vld [vmem:[%s4 + $0x28] sm:$0xff]
    %v457 = vld [vmem:[%s4 + $0x30] sm:$0xff]
    %v458 = vld [vmem:[%s4 + $0x38] sm:$0xff]
    %s459 = scalar_lea.vmem %s4, 64
    %v460 = vld [vmem:[%s459] sm:$0xff]
    %v461 = vld [vmem:[%s459 + $0x8] sm:$0xff]
    %v462 = vld [vmem:[%s459 + $0x10] sm:$0xff]
    %v463 = vld [vmem:[%s459 + $0x18] sm:$0xff]
    %v464 = vld [vmem:[%s459 + $0x20] sm:$0xff]
    %v465 = vld [vmem:[%s459 + $0x28] sm:$0xff]
    %v466 = vld [vmem:[%s459 + $0x30] sm:$0xff]
    %v467 = vld [vmem:[%s459 + $0x38] sm:$0xff]
    %s468 = scalar_lea.vmem %s4, 128
    %v469 = vld [vmem:[%s468] sm:$0xff]
    %v470 = vld [vmem:[%s468 + $0x8] sm:$0xff]
    %v471 = vld [vmem:[%s468 + $0x10] sm:$0xff]
    %v472 = vld [vmem:[%s468 + $0x18] sm:$0xff]
    %v473 = vld [vmem:[%s468 + $0x20] sm:$0xff]
    %v474 = vld [vmem:[%s468 + $0x28] sm:$0xff]
    %v475 = vld [vmem:[%s468 + $0x30] sm:$0xff]
    %v476 = vld [vmem:[%s468 + $0x38] sm:$0xff]
    %v478 = vsel %vm218, %v449, 0
    %v481 = vsel %vm218, %v450, 0
    %483 = vmatpush.msra.mxu0 0.0
    %484 = vmatpush.msra.mxu0 0.0
    %485 = vmatpush.msra.mxu0 0.0
    %486 = vmatpush.msra.mxu0 0.0
    %487 = vmatpush.msra.mxu0 0.0
    %488 = vmatpush.msra.mxu0 0.0
    %489 = vmatpush.msra.mxu0 0.0
    %490 = vmatpush.msra.mxu0 0.0
    %491 = vmatpush.msra.mxu0 %v476
    %492 = vmatpush.msra.mxu0 %v475
    %493 = vmatpush.msra.mxu0 %v474
    %494 = vmatpush.msra.mxu0 %v473
    %495 = vmatpush.msra.mxu0 %v472
    %496 = vmatpush.msra.mxu0 %v471
    %497 = vmatpush.msra.mxu0 %v470
    %498 = vmatpush.msra.mxu0 %v469
    %499 = vmatmul.f32.gmra.mxu0 %v478
    %v500 = vpop.f32.mrf.mxu0
    %v501 = vadd.f32 0.0, %v500
    %502 = vmatmul.f32.gmra.mxu0 %v481
    %v503 = vpop.f32.mrf.mxu0
    %v504 = vadd.f32 0.0, %v503
    %505 = vdwg.mxu0
    %vm506 = vcmp.ne.s32.totalorder %v203, 7
    %vm507 = vcmp.ne.s32.totalorder %v204, 7
    %v508 = vsel %vm506, %v501, 0.0
    %v509 = vsel %vm507, %v504, 0.0
    %v510 = vperm.slane %v446, 0
    %v512 = vsel %vm218, %v447, 0
    %v515 = vsel %vm218, %v448, 0
    %517 = vmatpush.msra.mxu0 0.0
    %518 = vmatpush.msra.mxu0 0.0
    %519 = vmatpush.msra.mxu0 0.0
    %520 = vmatpush.msra.mxu0 0.0
    %521 = vmatpush.msra.mxu0 0.0
    %522 = vmatpush.msra.mxu0 0.0
    %523 = vmatpush.msra.mxu0 0.0
    %524 = vmatpush.msra.mxu0 0.0
    %525 = vmatpush.msra.mxu0 %v458
    %526 = vmatpush.msra.mxu0 %v457
    %527 = vmatpush.msra.mxu0 %v456
    %528 = vmatpush.msra.mxu0 %v455
    %529 = vmatpush.msra.mxu0 %v454
    %530 = vmatpush.msra.mxu0 %v453
    %531 = vmatpush.msra.mxu0 %v452
    %532 = vmatpush.msra.mxu0 %v451
    %533 = vmatmul.f32.gmra.mxu0 %v512
    %v534 = vpop.f32.mrf.mxu0
    %v535 = vadd.f32 %v510, %v534
    %536 = vmatmul.f32.gmra.mxu0 %v515
    %v537 = vpop.f32.mrf.mxu0
    %v538 = vadd.f32 %v510, %v537
    %539 = vdwg.mxu0
    %540 = vmatpush.msra.mxu0 0.0
    %541 = vmatpush.msra.mxu0 0.0
    %542 = vmatpush.msra.mxu0 0.0
    %543 = vmatpush.msra.mxu0 0.0
    %544 = vmatpush.msra.mxu0 0.0
    %545 = vmatpush.msra.mxu0 0.0
    %546 = vmatpush.msra.mxu0 0.0
    %547 = vmatpush.msra.mxu0 0.0
    %548 = vmatpush.msra.mxu0 %v467
    %549 = vmatpush.msra.mxu0 %v466
    %550 = vmatpush.msra.mxu0 %v465
    %551 = vmatpush.msra.mxu0 %v464
    %552 = vmatpush.msra.mxu0 %v463
    %553 = vmatpush.msra.mxu0 %v462
    %554 = vmatpush.msra.mxu0 %v461
    %555 = vmatpush.msra.mxu0 %v460
    %556 = vmatmul.f32.gmra.mxu0 %v512
    %v557 = vpop.f32.mrf.mxu0
    %v558 = vadd.f32 %v508, %v557
    %559 = vmatmul.f32.gmra.mxu0 %v515
    %v560 = vpop.f32.mrf.mxu0
    %v561 = vadd.f32 %v509, %v560
    %562 = vdwg.mxu0
    %v563 = vadd.f32 %v558, %v510
    %v564 = vadd.f32 %v561, %v510
    %v565 = vtanh.pop %v535
    %v566 = vtanh.pop %v538
    %567 = vst [vmem:[#allocation11] ss:$2 sm:$0xff] %v565
    %s568 = scalar_lea.vmem [#allocation11], 16
    %569 = vst [vmem:[%s568] ss:$2 sm:$0xff] %v566
    %v570 = vtanh.pop %v563
    %v571 = vtanh.pop %v564
    %s572 = scalar_lea.vmem [#allocation11], 1
    %573 = vst [vmem:[%s572] ss:$2 sm:$0xff] %v570
    %s574 = scalar_lea.vmem [#allocation11], 17
    %575 = vst [vmem:[%s574] ss:$2 sm:$0xff] %v571
    // Predicated region
    $region34: #{autoencoder_forward.1} parent=1 // pred_check
      _
    $region35: #{autoencoder_forward.1} parent=1 // pred_check_branch
      %577 = sbr.rel (0) target = $region37
    $region36: #{autoencoder_forward.1} parent=1 // pred_region
      %579 = vsyncadd [#allocation8], 0
      %s580 = sshll.u32 [#allocation11], 4
      %s581 = int_to_ptr.vmem [resolvable:$true] %s580
      %s582 = sshll.u32 %s6, 4
      %s583 = int_to_ptr.hbm [resolvable:$true] %s582
      %588 = dma.vmem_to_hbm [thread:$0]  %s581, 512, %s583, [#allocation8], 128, 128, 8
    $region37: #{autoencoder_forward.1} parent=1 // pred_fallthru
      _
    // Predicated region
    $region38: #{autoencoder_forward.1} parent=1 // pred_check
      _
    $region39: #{autoencoder_forward.1} parent=1 // pred_check_branch
      %590 = sbr.rel (0) target = $region41
    $region40: #{autoencoder_forward.1} parent=1 // pred_region
      %592 = dma.done [#allocation8], 512
    $region41: #{autoencoder_forward.1} parent=1 // pred_fallthru
      _
    %593 = vsyncpa [#allocation7], 1
    %594 = vsyncpa [#allocation10], 1
    %595 = vsyncpa [#allocation8], 1

</llo_original>
